<compile_context>
chip_gen: v7x
topology: tpu7x:2x2x1
jax: 0.10.0
libtpu: 0.0.40
codegen_flags: <defaults>
</compile_context>

<pallas_src>
import functools
import math

import jax
import jax.numpy as jnp
from jax import lax
from jax.experimental import pallas as pl
from jax.experimental.pallas import tpu as pltpu


# ---------------------------------------------------------------------------
# helpers
# ---------------------------------------------------------------------------
def _round_up(v, m):
    return (v + m - 1) // m * m


def _cdiv(a, b):
    return -(-a // b)


def _sublane_multiple(dtype):
    # second-minor tile: 8 rows for 32-bit dtypes, 16 for 16-bit (bf16), 32 for 8-bit.
    return 8 * (4 // max(1, jnp.dtype(dtype).itemsize))


def _vmem_params():
    """Generation-aware (per-step VMEM budget, vmem_limit_bytes)."""
    cap = None
    try:
        info = pltpu.get_tpu_info()
        for name in ("vmem_capacity_bytes", "vmem_bytes", "vmem_size_bytes"):
            v = getattr(info, name, None)
            if v:
                cap = int(v)
                break
    except Exception:
        cap = None
    if cap is None:
        cap = 64 * 2**20                       # conservative: assume v7x-sized VMEM
    if cap >= 100 * 2**20:                     # v5e / v6e: 128 MiB per TensorCore
        return 40 * 2**20, 100 * 2**20
    return 20 * 2**20, 48 * 2**20              # v7x: 64 MiB per TensorCore


def _pick_tiles(bx, by, lxp, lyp, d, itemsize, budget):
    """Asymmetric pair-block sizes (TI, TJ).

    TI*LXp and TJ*LYp are kept multiples of 128 (clean MXU / XLU-transpose tiling).
    TJ is just big enough for ~256 lanes of MXU N-dim; TI is maximized under the VMEM
    budget (the x block is held across the inner j loop, so bigger TI divides the
    dominant y re-streaming traffic), then shrunk to minimize batch padding.
    """
    ai = 128 // math.gcd(lxp, 128)       # ti multiple of ai  => ti*lxp % 128 == 0
    aj = 128 // math.gcd(lyp, 128)       # tj multiple of aj  => tj*lyp % 128 == 0

    tj_cap = _round_up(by, aj)
    tj = aj
    while tj * lyp < 256 and tj + aj <= tj_cap:
        tj += aj
    tj = min(tj, tj_cap)

    def est(ti_, tj_):
        rows, cols = ti_ * lxp, tj_ * lyp
        return (2 * (rows + cols) * d * itemsize          # double-buffered input tiles
                + 4 * rows * cols * 4                     # f32 A, A^T and masked copies
                + (rows * ti_ + cols * tj_) * 4           # in-kernel 0/1 selectors
                + (ti_ * cols + tj_ * rows) * 4)          # col_max / row_max

    ti_cap = _round_up(bx, ai)
    ti = ai
    t = ai
    while t <= ti_cap and est(t, tj) <= budget:
        ti = t
        t += ai
    # smallest aligned TI that keeps the same number of i-blocks (less batch padding)
    gi = _cdiv(bx, ti)
    ti = min(ti_cap, _round_up(_cdiv(bx, gi), ai))
    # keep >= 2 grid blocks when the batch allows it (v7x megacore has 2 TensorCores)
    if _cdiv(bx, ti) * _cdiv(by, tj) == 1 and bx > ai:
        ti = _round_up(_cdiv(bx, 2), ai)
    return ti, tj


# ---------------------------------------------------------------------------
# Block kernel: one (TI, TJ) block of image/text pairs per grid step.
#   x_ref : (TI*LXp, D)  region features (length-invalid token rows already zeroed)
#   y_ref : (TJ*LYp, D)  word features
#   o_refs: up to two (1, 1, TI, TJ) / (1, 1, TJ, TI) blocks:
#           term1[i,j] = sum_w max_r A[i,j,r,w]   (emitted iff compute_t1)
#           term2[j,i] = sum_r max_w A[i,j,r,w]   (emitted iff compute_t2)
# One MXU matmul produces the whole alignment block; term2 reuses it via an XLU
# transpose (no second matmul).  Segment sums use in-kernel 0/1 selector matmuls.
# ---------------------------------------------------------------------------
def _block_align_kernel(x_ref, y_ref, *o_refs, ti, tj, lxp, lyp, lx, ly,
                        compute_t1, compute_t2):
    x = x_ref[...]                      # native (bf16) dtype straight to the MXU
    y = y_ref[...]
    n = 0
    a = None
    if compute_t1:
        a = lax.dot_general(x, y, (((1,), (1,)), ((), ())),
                            preferred_element_type=jnp.float32)    # (ti*lxp, tj*lyp)
        a1 = a.reshape(ti, lxp, tj * lyp)                          # sublane-aligned split
        if lxp > lx:
            # exclude sublane-padding region rows from the max (length masking is
            # handled exactly by the wrapper-side zeroing of invalid token rows)
            pad_r = lax.broadcasted_iota(jnp.int32, (lxp, 1), 0) >= lx
            a1 = jnp.where(pad_r, -jnp.inf, a1)
        col_max = jnp.max(a1, axis=1)                              # (ti, tj*lyp)
        ky = lax.broadcasted_iota(jnp.int32, (tj * lyp, tj), 0)
        cj = lax.broadcasted_iota(jnp.int32, (tj * lyp, tj), 1) * lyp
        sel_y = ((ky >= cj) & (ky < cj + ly)).astype(jnp.float32)  # (tj*lyp, tj)
        o_refs[n][0, 0] = jnp.dot(col_max, sel_y,
                                  preferred_element_type=jnp.float32)   # (ti, tj)
        n += 1
    if compute_t2:
        if a is not None:
            at = jnp.transpose(a)       # XLU transpose: no second MXU matmul
        else:
            at = lax.dot_general(y, x, (((1,), (1,)), ((), ())),
                                 preferred_element_type=jnp.float32)
        a2 = at.reshape(tj, lyp, ti * lxp)
        if lyp > ly:
            pad_w = lax.broadcasted_iota(jnp.int32, (lyp, 1), 0) >= ly
            a2 = jnp.where(pad_w, -jnp.inf, a2)
        row_max = jnp.max(a2, axis=1)                              # (tj, ti*lxp)
        kx = lax.broadcasted_iota(jnp.int32, (ti * lxp, ti), 0)
        ci = lax.broadcasted_iota(jnp.int32, (ti * lxp, ti), 1) * lxp
        sel_x = ((kx >= ci) & (kx < ci + lx)).astype(jnp.float32)  # (ti*lxp, ti)
        o_refs[n][0, 0] = jnp.dot(row_max, sel_x,
                                  preferred_element_type=jnp.float32)   # (tj, ti)


def pairwise_alignment(x, y, x_len=None, y_len=None, *, masked, term_max_r,
                       term_max_w, compute_dtype=jnp.bfloat16):
    """aggr[i, j] over x[i] (Lx, D) vs y[j] (Ly, D):
       term_max_r -> adds  sum_w max_r <x_r, y_w>
       term_max_w -> adds  sum_r max_w <x_r, y_w>
       masked     -> alignments at r >= x_len[i] or w >= y_len[j] behave as 0
                     (PyTorch masked_fill_(0) semantics) before max/sum."""
    bx, lx, d = x.shape
    by, ly, d2 = y.shape
    assert d == d2 and (term_max_r or term_max_w)

    # bf16 MXU inputs + f32 accumulation (deliberate numerics tradeoff).
    if compute_dtype is not None:
        x = x.astype(compute_dtype)
        y = y.astype(compute_dtype)

    # length masking == zeroing invalid token rows of the inputs (exact, by linearity)
    if masked:
        assert x_len is not None and y_len is not None
        x_len = jnp.asarray(x_len, jnp.int32)
        y_len = jnp.asarray(y_len, jnp.int32)
        xv = (jnp.arange(lx)[None, :] < x_len[:, None]).astype(x.dtype)
        yv = (jnp.arange(ly)[None, :] < y_len[:, None]).astype(y.dtype)
        x = x * xv[:, :, None]
        y = y * yv[:, :, None]

    mult = _sublane_multiple(x.dtype)
    lxp, lyp = _round_up(lx, mult), _round_up(ly, mult)

    budget, vmem_limit = _vmem_params()
    itemsize = jnp.dtype(x.dtype).itemsize
    ti, tj = _pick_tiles(bx, by, lxp, lyp, d, itemsize, budget)
    bxp, byp = _round_up(bx, ti), _round_up(by, tj)
    gi, gj = bxp // ti, byp // tj

    x = jnp.pad(x, ((0, bxp - bx), (0, lxp - lx), (0, 0)))
    y = jnp.pad(y, ((0, byp - by), (0, lyp - ly), (0, 0)))
    x2d = x.reshape(bxp * lxp, d)
    y2d = y.reshape(byp * lyp, d)

    kernel = functools.partial(_block_align_kernel, ti=ti, tj=tj, lxp=lxp, lyp=lyp,
                               lx=lx, ly=ly, compute_t1=term_max_r,
                               compute_t2=term_max_w)

    out_shapes, out_specs = [], []
    if term_max_r:
        out_shapes.append(jax.ShapeDtypeStruct((gi, gj, ti, tj), jnp.float32))
        out_specs.append(pl.BlockSpec((1, 1, ti, tj), lambda i, j: (i, j, 0, 0)))
    if term_max_w:
        out_shapes.append(jax.ShapeDtypeStruct((gj, gi, tj, ti), jnp.float32))
        out_specs.append(pl.BlockSpec((1, 1, tj, ti), lambda i, j: (j, i, 0, 0)))

    outs = pl.pallas_call(
        kernel,
        out_shape=tuple(out_shapes),
        grid_spec=pltpu.PrefetchScalarGridSpec(
            num_scalar_prefetch=0,
            grid=(gi, gj),
            in_specs=[
                pl.BlockSpec((ti * lxp, d), lambda i, j: (i, 0)),   # held across inner j
                pl.BlockSpec((tj * lyp, d), lambda i, j: (j, 0)),   # re-streamed gi times
            ],
            out_specs=out_specs,
        ),
        compiler_params=pltpu.CompilerParams(
            dimension_semantics=("parallel", "parallel"),   # megacore sharding on v7x
            vmem_limit_bytes=vmem_limit,
        ),
    )(x2d, y2d)
    if not isinstance(outs, (list, tuple)):
        outs = (outs,)

    result = jnp.zeros((bx, by), jnp.float32)
    k = 0
    if term_max_r:
        result = result + outs[k].transpose(0, 2, 1, 3).reshape(bxp, byp)[:bx, :by]
        k += 1
    if term_max_w:
        result = result + outs[k].transpose(0, 2, 1, 3).reshape(byp, bxp)[:by, :bx].T
        k += 1
    return result


# ---------------------------------------------------------------------------
# Paired (diagonal-only) kernel: one (x[b], y[y_idx[b]]) pair per grid step.
# Used for the consistency losses, where only the diagonal of the i2i / t2t
# similarity matrix is consumed (O(B) instead of O(B^2) work).  The hard-negative
# item is gathered via a scalar-prefetched index in the y BlockSpec index_map.
# ---------------------------------------------------------------------------
def _paired_align_kernel(yidx_ref, x_ref, y_ref, o_ref, *, lxp, lyp, lx, ly,
                         compute_t1, compute_t2):
    del yidx_ref  # only consumed by the index_maps
    x = x_ref[0]                       # (lxp, D)
    y = y_ref[0]                       # (lyp, D)
    a = lax.dot_general(x, y, (((1,), (1,)), ((), ())),
                        preferred_element_type=jnp.float32)        # (lxp, lyp)
    s = jnp.float32(0.0)
    if compute_t1:
        a1 = a
        if lxp > lx:
            pad_r = lax.broadcasted_iota(jnp.int32, (lxp, 1), 0) >= lx
            a1 = jnp.where(pad_r, -jnp.inf, a1)
        col_max = jnp.max(a1, axis=0, keepdims=True)               # (1, lyp)
        w_valid = lax.broadcasted_iota(jnp.int32, (1, lyp), 1) < ly
        s = s + jnp.sum(jnp.where(w_valid, col_max, 0.0))
    if compute_t2:
        a2 = a
        if lyp > ly:
            pad_w = lax.broadcasted_iota(jnp.int32, (1, lyp), 1) >= ly
            a2 = jnp.where(pad_w, -jnp.inf, a2)
        row_max = jnp.max(a2, axis=1, keepdims=True)               # (lxp, 1)
        # padding / length-invalid rows are all-zero -> their row max is 0 -> add 0
        s = s + jnp.sum(row_max)
    o_ref[...] = jnp.full((1, 1, 128), s, dtype=jnp.float32)


def paired_alignment(x, y, y_idx, x_len=None, y_len=None, *, masked, term_max_r,
                     term_max_w, compute_dtype=jnp.bfloat16):
    """Per-pair score between x[b] and y[y_idx[b]]; returns a (Bx,) vector."""
    bx, lx, d = x.shape
    by, ly, d2 = y.shape
    assert d == d2 and (term_max_r or term_max_w)
    y_idx = jnp.asarray(y_idx, jnp.int32)

    if compute_dtype is not None:
        x = x.astype(compute_dtype)
        y = y.astype(compute_dtype)

    if masked:
        assert x_len is not None and y_len is not None
        x_len = jnp.asarray(x_len, jnp.int32)
        y_len = jnp.asarray(y_len, jnp.int32)
        xv = (jnp.arange(lx)[None, :] < x_len[:, None]).astype(x.dtype)
        yv = (jnp.arange(ly)[None, :] < y_len[:, None]).astype(y.dtype)
        x = x * xv[:, :, None]
        y = y * yv[:, :, None]

    mult = _sublane_multiple(x.dtype)
    lxp, lyp = _round_up(lx, mult), _round_up(ly, mult)
    x3 = jnp.pad(x, ((0, 0), (0, lxp - lx), (0, 0)))
    y3 = jnp.pad(y, ((0, 0), (0, lyp - ly), (0, 0)))

    kernel = functools.partial(_paired_align_kernel, lxp=lxp, lyp=lyp, lx=lx, ly=ly,
                               compute_t1=term_max_r, compute_t2=term_max_w)

    out = pl.pallas_call(
        kernel,
        out_shape=jax.ShapeDtypeStruct((bx, 1, 128), jnp.float32),
        grid_spec=pltpu.PrefetchScalarGridSpec(
            num_scalar_prefetch=1,
            grid=(bx,),
            in_specs=[
                pl.BlockSpec((1, lxp, d), lambda b, yi: (b, 0, 0)),
                pl.BlockSpec((1, lyp, d), lambda b, yi: (yi[b], 0, 0)),  # SMEM-indexed gather
            ],
            out_specs=pl.BlockSpec((1, 1, 128), lambda b, yi: (b, 0, 0)),
        ),
        compiler_params=pltpu.CompilerParams(
            dimension_semantics=("arbitrary",),
        ),
    )(y_idx, x3, y3)
    return out[:, 0, 0]


# ---------------------------------------------------------------------------
# intra_similarity (i2i / t2t) full-matrix variants reuse the block kernel.
# ---------------------------------------------------------------------------
def intra_similarity_i2i(im_set, im_set_other, compute_dtype=jnp.bfloat16):
    # PyTorch i2i: trim the first token, NO length masking, alignments.max(2)[0].sum(2)
    return pairwise_alignment(im_set[:, 1:, :], im_set_other[:, 1:, :],
                              masked=False, term_max_r=True, term_max_w=False,
                              compute_dtype=compute_dtype)


def intra_similarity_t2t(s_a, s_b, len_a, len_b, compute_dtype=jnp.bfloat16):
    # PyTorch t2t: trim [:, 1:-2, :], mask with len-3, max(2).sum(2) + max(3).sum(2)
    return pairwise_alignment(s_a[:, 1:-2, :], s_b[:, 1:-2, :],
                              jnp.asarray(len_a, jnp.int32) - 3,
                              jnp.asarray(len_b, jnp.int32) - 3,
                              masked=True, term_max_r=True, term_max_w=True,
                              compute_dtype=compute_dtype)


# ---------------------------------------------------------------------------
# Contrastive glue (tiny BxB work) in plain JAX.
# ---------------------------------------------------------------------------
def compute_contrastive_loss(scores, margin):
    b = scores.shape[0]
    diagonal = jnp.diagonal(scores).reshape(b, 1)
    d1 = diagonal            # d1[i, j] = scores[i, i]
    d2 = diagonal.T          # d2[i, j] = scores[j, j]
    cost_s = jnp.maximum(margin + scores - d1, 0.0)
    cost_im = jnp.maximum(margin + scores - d2, 0.0)
    # NOTE: the original TERAN code's eye-mask (diagonal clearing) is commented out in
    # the reference module, so hard negatives are argmax over the raw (scores - d)
    # including the diagonal — replicated exactly.
    hn_s = jnp.argmax(scores - d1, axis=1)
    hn_im = jnp.argmax(scores - d2, axis=0)
    idx = jnp.arange(b)
    cost_s_sum = cost_s[idx, hn_s].sum()
    cost_im_sum = cost_im[hn_im, idx].sum()
    return cost_s_sum, cost_im_sum, hn_s, hn_im


class AlignmentContrastiveLossPallas:
    def __init__(self, margin=0.0, aggregation="MrSw", lambda_=1.0,
                 return_similarity_mat=False, mode=False,
                 compute_dtype=jnp.bfloat16):
        self.margin = float(margin)
        self.aggregation = aggregation
        self.lambda_ = float(lambda_)
        self.return_similarity_mat = return_similarity_mat
        self.mode = mode
        # bf16 MXU inputs with f32 accumulation (deliberate precision tradeoff);
        # pass compute_dtype=None for full input-precision matmuls.
        self.compute_dtype = compute_dtype

    def _aggr_similarity(self, im_set, s_seq, im_len, s_len):
        x = im_set[:, 1:, :]
        y = s_seq[:, 1:-2, :]
        xl = im_len - 1
        yl = s_len - 3
        cd = self.compute_dtype
        if self.aggregation in ("MrSw", "symm"):
            return pairwise_alignment(x, y, xl, yl, masked=True,
                                      term_max_r=True, term_max_w=True,
                                      compute_dtype=cd)
        elif self.aggregation == "MwSr":
            return pairwise_alignment(x, y, xl, yl, masked=True,
                                      term_max_r=False, term_max_w=True,
                                      compute_dtype=cd)
        elif self.aggregation == "MrAVGw":
            # TODO(synk): captions with s_len <= 3 would divide by zero/negative here.
            t1 = pairwise_alignment(x, y, xl, yl, masked=True,
                                    term_max_r=True, term_max_w=False,
                                    compute_dtype=cd)
            return t1 / yl[None, :].astype(jnp.float32)
        else:
            # TODO(synk): 'sum'/'mean'/'scan-sentences' aggregations not ported.
            raise NotImplementedError(self.aggregation)

    def __call__(self, im_set, s_seq, im_len, s_len):
        im_len = jnp.asarray(im_len, jnp.int32)
        s_len = jnp.asarray(s_len, jnp.int32)
        cd = self.compute_dtype

        if self.mode == "i2i":
            return intra_similarity_i2i(im_set, s_seq, compute_dtype=cd)
        if self.mode == "t2t":
            return intra_similarity_t2t(im_set, s_seq, im_len, s_len, compute_dtype=cd)

        aggr = self._aggr_similarity(im_set, s_seq, im_len, s_len)   # (B, B)
        if self.return_similarity_mat:
            return aggr

        loss_i2t, loss_t2i, hn_s, hn_im = compute_contrastive_loss(aggr, self.margin)
        gt_scores = jnp.diagonal(aggr)                               # (B,)

        # visual-consistency loss: only diag(i2i(im_set, im_set[hn_s])) is needed, so
        # use the O(B) paired kernel with the hard-negative indices scalar-prefetched
        # into the y index_map (no wrapper-side HBM gather of im_set[hn_s]).
        sim_i2i = paired_alignment(im_set[:, 1:, :], im_set[:, 1:, :], hn_s,
                                   masked=False, term_max_r=True, term_max_w=False,
                                   compute_dtype=cd)
        loss_vc = jnp.maximum(self.margin + sim_i2i - gt_scores, 0.0).sum() / 100.0

        # textual-consistency loss: same trick for diag(t2t(s_seq, s_seq[hn_im])).
        sim_t2t = paired_alignment(s_seq[:, 1:-2, :], s_seq[:, 1:-2, :], hn_im,
                                   s_len - 3, s_len - 3, masked=True,
                                   term_max_r=True, term_max_w=True,
                                   compute_dtype=cd)
        loss_tc = jnp.maximum(self.margin + sim_t2t - gt_scores, 0.0).sum() / 10.0

        # pair-swap loss over mismatching hard negatives
        mismatch = (hn_s != hn_im)
        ps_vals = jnp.maximum(self.margin + aggr[hn_im, hn_s] - gt_scores, 0.0)
        loss_ps = jnp.sum(jnp.where(mismatch, ps_vals, 0.0))

        # TODO(synk): original prints the loss breakdown and appends it to
        # '<name_exp>/loss.txt'; file I/O / printing side effects are omitted.
        return loss_i2t + loss_t2i + self.lambda_ * (loss_vc + loss_tc + loss_ps)


# ---------------------------------------------------------------------------
# Pure-JAX references (sanity checks only).
# ---------------------------------------------------------------------------
def _ref_aggr_mrsw(im_set, s_seq, im_len, s_len):
    x = im_set[:, 1:, :]
    y = s_seq[:, 1:-2, :]
    al = jnp.einsum("ird,jwd->ijrw", x, y, precision=lax.Precision.HIGHEST)
    rmask = jnp.arange(x.shape[1])[None, :] >= (im_len - 1)[:, None]   # (B, Lx)
    wmask = jnp.arange(y.shape[1])[None, :] >= (s_len - 3)[:, None]    # (B, Ly)
    bad = rmask[:, None, :, None] | wmask[None, :, None, :]
    al = jnp.where(bad, 0.0, al)
    return al.max(2).sum(2) + al.max(3).sum(2)


def _ref_i2i(im_set, im_set_other):
    x = im_set[:, 1:, :]
    y = im_set_other[:, 1:, :]
    al = jnp.einsum("ird,jwd->ijrw", x, y, precision=lax.Precision.HIGHEST)
    return al.max(2).sum(2)


if __name__ == "__main__":
    key = jax.random.PRNGKey(0)
    B, R, S, D = 4, 10, 12, 32         # regions (incl. CLS), words (incl. specials), hidden
    k1, k2 = jax.random.split(key)
    im_set = jax.random.normal(k1, (B, R, D), dtype=jnp.float32)
    s_seq = jax.random.normal(k2, (B, S, D), dtype=jnp.float32)
    im_len = jnp.array([10, 7, 9, 6], dtype=jnp.int32)
    s_len = jnp.array([12, 9, 8, 10], dtype=jnp.int32)

    # bf16-rounded copies so the reference comparison matches the kernel's bf16 MXU
    # inputs (f32 accumulation) — a deliberate speed/precision tradeoff.
    im_b = im_set.astype(jnp.bfloat16).astype(jnp.float32)
    s_b = s_seq.astype(jnp.bfloat16).astype(jnp.float32)

    # similarity-matrix path (return_similarity_mat=True), masked MrSw aggregation
    sim_fn = AlignmentContrastiveLossPallas(margin=0.2, aggregation="MrSw",
                                            return_similarity_mat=True)
    sim = sim_fn(im_set, s_seq, im_len, s_len)
    jax.block_until_ready(sim)
    ref = _ref_aggr_mrsw(im_b, s_b, im_len, s_len)
    assert jnp.allclose(sim, ref, rtol=2e-2, atol=2e-2), (sim, ref)

    # unmasked full-matrix i2i path (exercises -inf handling of sublane padding rows)
    i2i_fn = AlignmentContrastiveLossPallas(mode="i2i")
    sim_i2i = i2i_fn(im_set, im_set, im_len, im_len)
    jax.block_until_ready(sim_i2i)
    ref_i2i = _ref_i2i(im_b, im_b)
    assert jnp.allclose(sim_i2i, ref_i2i, rtol=2e-2, atol=2e-2), (sim_i2i, ref_i2i)

    # paired (diagonal-only) kernel used by the consistency losses
    diag = paired_alignment(im_set[:, 1:, :], im_set[:, 1:, :], jnp.arange(B),
                            masked=False, term_max_r=True, term_max_w=False)
    jax.block_until_ready(diag)
    assert jnp.allclose(diag, jnp.diagonal(ref_i2i), rtol=2e-2, atol=2e-2), diag

    # full loss path (block kernel + scalar-prefetch-driven paired kernels)
    loss_fn = AlignmentContrastiveLossPallas(margin=0.2, aggregation="MrSw", lambda_=1.0)
    loss = loss_fn(im_set, s_seq, im_len, s_len)
    jax.block_until_ready(loss)
    assert bool(jnp.isfinite(loss))

    print("KERNEL_OK")
</pallas_src>

<mosaic_0001>
module attributes {stable_mosaic.version = 11 : i64} {
  func.func @_block_align_kernel(%arg0: i32, %arg1: i32, %arg2: memref<128x32xbf16, #tpu.memory_space<vmem>>, %arg3: memref<128x32xbf16, #tpu.memory_space<vmem>>, %arg4: memref<1x1x8x8xf32, #tpu.memory_space<vmem>>, %arg5: memref<1x1x8x8xf32, #tpu.memory_space<vmem>>) attributes {dimension_semantics = [#tpu.dimension_semantics<parallel>, #tpu.dimension_semantics<parallel>], iteration_bounds = array<i64: 1, 1>, scalar_prefetch = 0 : i64, scratch_operands = 0 : i64, tpu.core_type = #tpu.core_type<tc>, window_params = [{transform_indices = @transform_0, window_bounds = array<i64: 128, 32>}, {transform_indices = @transform_1, window_bounds = array<i64: 128, 32>}, {transform_indices = @transform_2, window_bounds = array<i64: 1, 1, 8, 8>}, {transform_indices = @transform_3, window_bounds = array<i64: 1, 1, 8, 8>}]} {
    %c0 = arith.constant 0 : index
    %c0_0 = arith.constant 0 : index
    %0 = vector.load %arg2[%c0, %c0_0] : memref<128x32xbf16, #tpu.memory_space<vmem>>, vector<128x32xbf16>
    %c0_1 = arith.constant 0 : index
    %c0_2 = arith.constant 0 : index
    %1 = vector.load %arg3[%c0_1, %c0_2] : memref<128x32xbf16, #tpu.memory_space<vmem>>, vector<128x32xbf16>
    %cst = arith.constant dense<0.000000e+00> : vector<128x128xf32>
    %2 = tpu.matmul %0, %1, %cst {dimension_numbers = #tpu.dot_dimension_numbers<[1], [1], [0], [0], [0, 0, 1, 0], [], []>} : vector<128x32xbf16>, vector<128x32xbf16>, vector<128x128xf32> -> vector<128x128xf32>
    %3 = vector.shape_cast %2 : vector<128x128xf32> to vector<8x16x128xf32>
    %4 = tpu.iota {dimensions = array<i32: 0>} : vector<16x1xi32>
    %c9_i32 = arith.constant 9 : i32
    %5 = vector.broadcast %c9_i32 : i32 to vector<16x1xi32>
    %6 = arith.cmpi sge, %4, %5 : vector<16x1xi32>
    %cst_3 = arith.constant 0xFF800000 : f32
    %7 = vector.shape_cast %6 : vector<16x1xi1> to vector<1x16x1xi1>
    %8 = vector.broadcast %7 : vector<1x16x1xi1> to vector<8x16x128xi1>
    %9 = vector.broadcast %cst_3 : f32 to vector<8x16x128xf32>
    %10 = arith.select %8, %9, %3 : vector<8x16x128xi1>, vector<8x16x128xf32>
    %cst_4 = arith.constant dense<0xFF800000> : vector<8x128xf32>
    %11 = vector.multi_reduction <maximumf>, %10, %cst_4 [1] : vector<8x16x128xf32> to vector<8x128xf32>
    %12 = tpu.iota {dimensions = array<i32: 0>} : vector<128x8xi32>
    %13 = tpu.iota {dimensions = array<i32: 1>} : vector<128x8xi32>
    %c16_i32 = arith.constant 16 : i32
    %14 = vector.broadcast %c16_i32 : i32 to vector<128x8xi32>
    %15 = arith.muli %13, %14 : vector<128x8xi32>
    %16 = arith.cmpi sge, %12, %15 : vector<128x8xi32>
    %c9_i32_5 = arith.constant 9 : i32
    %17 = vector.broadcast %c9_i32_5 : i32 to vector<128x8xi32>
    %18 = arith.addi %15, %17 : vector<128x8xi32>
    %19 = arith.cmpi slt, %12, %18 : vector<128x8xi32>
    %20 = arith.andi %16, %19 : vector<128x8xi1>
    %21 = arith.extui %20 : vector<128x8xi1> to vector<128x8xi32>
    %22 = arith.sitofp %21 : vector<128x8xi32> to vector<128x8xf32>
    %cst_6 = arith.constant dense<0.000000e+00> : vector<8x8xf32>
    %23 = tpu.matmul %11, %22, %cst_6 {dimension_numbers = #tpu.dot_dimension_numbers<[1], [0], [0], [1], [0, 0, 1, 1], [], []>} : vector<8x128xf32>, vector<128x8xf32>, vector<8x8xf32> -> vector<8x8xf32>
    %c0_7 = arith.constant 0 : index
    %c0_8 = arith.constant 0 : index
    %c0_9 = arith.constant 0 : index
    %c0_10 = arith.constant 0 : index
    %24 = vector.load %arg4[%c0_7, %c0_8, %c0_9, %c0_10] : memref<1x1x8x8xf32, #tpu.memory_space<vmem>>, vector<1x1x8x8xf32>
    %25 = vector.shape_cast %24 : vector<1x1x8x8xf32> to vector<8x8xf32>
    %26 = vector.shape_cast %23 : vector<8x8xf32> to vector<1x1x8x8xf32>
    tpu.vector_store %arg4[%c0_7, %c0_8, %c0_9, %c0_10], %26 {strides = array<i32>} : memref<1x1x8x8xf32, #tpu.memory_space<vmem>>, vector<1x1x8x8xf32>,
    %27 = tpu.transpose %2, [1, 0] : vector<128x128xf32> -> vector<128x128xf32>
    %28 = vector.shape_cast %27 : vector<128x128xf32> to vector<8x16x128xf32>
    %29 = tpu.iota {dimensions = array<i32: 0>} : vector<16x1xi32>
    %c9_i32_11 = arith.constant 9 : i32
    %30 = vector.broadcast %c9_i32_11 : i32 to vector<16x1xi32>
    %31 = arith.cmpi sge, %29, %30 : vector<16x1xi32>
    %cst_12 = arith.constant 0xFF800000 : f32
    %32 = vector.shape_cast %31 : vector<16x1xi1> to vector<1x16x1xi1>
    %33 = vector.broadcast %32 : vector<1x16x1xi1> to vector<8x16x128xi1>
    %34 = vector.broadcast %cst_12 : f32 to vector<8x16x128xf32>
    %35 = arith.select %33, %34, %28 : vector<8x16x128xi1>, vector<8x16x128xf32>
    %cst_13 = arith.constant dense<0xFF800000> : vector<8x128xf32>
    %36 = vector.multi_reduction <maximumf>, %35, %cst_13 [1] : vector<8x16x128xf32> to vector<8x128xf32>
    %37 = tpu.iota {dimensions = array<i32: 0>} : vector<128x8xi32>
    %38 = tpu.iota {dimensions = array<i32: 1>} : vector<128x8xi32>
    %c16_i32_14 = arith.constant 16 : i32
    %39 = vector.broadcast %c16_i32_14 : i32 to vector<128x8xi32>
    %40 = arith.muli %38, %39 : vector<128x8xi32>
    %41 = arith.cmpi sge, %37, %40 : vector<128x8xi32>
    %c9_i32_15 = arith.constant 9 : i32
    %42 = vector.broadcast %c9_i32_15 : i32 to vector<128x8xi32>
    %43 = arith.addi %40, %42 : vector<128x8xi32>
    %44 = arith.cmpi slt, %37, %43 : vector<128x8xi32>
    %45 = arith.andi %41, %44 : vector<128x8xi1>
    %46 = arith.extui %45 : vector<128x8xi1> to vector<128x8xi32>
    %47 = arith.sitofp %46 : vector<128x8xi32> to vector<128x8xf32>
    %cst_16 = arith.constant dense<0.000000e+00> : vector<8x8xf32>
    %48 = tpu.matmul %36, %47, %cst_16 {dimension_numbers = #tpu.dot_dimension_numbers<[1], [0], [0], [1], [0, 0, 1, 1], [], []>} : vector<8x128xf32>, vector<128x8xf32>, vector<8x8xf32> -> vector<8x8xf32>
    %c0_17 = arith.constant 0 : index
    %c0_18 = arith.constant 0 : index
    %c0_19 = arith.constant 0 : index
    %c0_20 = arith.constant 0 : index
    %49 = vector.load %arg5[%c0_17, %c0_18, %c0_19, %c0_20] : memref<1x1x8x8xf32, #tpu.memory_space<vmem>>, vector<1x1x8x8xf32>
    %50 = vector.shape_cast %49 : vector<1x1x8x8xf32> to vector<8x8xf32>
    %51 = vector.shape_cast %48 : vector<8x8xf32> to vector<1x1x8x8xf32>
    tpu.vector_store %arg5[%c0_17, %c0_18, %c0_19, %c0_20], %51 {strides = array<i32>} : memref<1x1x8x8xf32, #tpu.memory_space<vmem>>, vector<1x1x8x8xf32>,
    return
  }
  func.func @transform_0(%arg0: i32, %arg1: i32) -> (i32, i32) {
    %c0_i32 = arith.constant 0 : i32
    %c0_i32_0 = arith.constant 0 : i32
    return %arg0, %c0_i32 : i32, i32
  }
  func.func @transform_1(%arg0: i32, %arg1: i32) -> (i32, i32) {
    %c0_i32 = arith.constant 0 : i32
    %c0_i32_0 = arith.constant 0 : i32
    return %arg1, %c0_i32 : i32, i32
  }
  func.func @transform_2(%arg0: i32, %arg1: i32) -> (i32, i32, i32, i32) {
    %c0_i32 = arith.constant 0 : i32
    %c0_i32_0 = arith.constant 0 : i32
    %c0_i32_1 = arith.constant 0 : i32
    return %arg0, %arg1, %c0_i32, %c0_i32_0 : i32, i32, i32, i32
  }
  func.func @transform_3(%arg0: i32, %arg1: i32) -> (i32, i32, i32, i32) {
    %c0_i32 = arith.constant 0 : i32
    %c0_i32_0 = arith.constant 0 : i32
    %c0_i32_1 = arith.constant 0 : i32
    return %arg1, %arg0, %c0_i32, %c0_i32_0 : i32, i32, i32, i32
  }
}

</mosaic_0001>

<llo_original>
// kernel: tpu_custom_call.1
$region0: #{tpu_custom_call.1}
  #allocation0 [shape = 'u32[]', space=smem, size = 0x4, offset = 0x4, fixed_abs, tag = 'smem constant byte address 0x4 - core index']
  #allocation1 [shape = 'u32[144,128]{1,0:T(1,128)}', space=vmem, size = 0x12000, scoped, tag = 'internal scratch']
  %s0 = inlined_call_operand.vmem [shape: bf16[128,32], index: 0, kind: input, shape index: {}]
  %s1 = inlined_call_operand.vmem [shape: bf16[128,32], index: 1, kind: input, shape index: {}]
  %s2 = inlined_call_operand.hbm [shape: f32[1,1,8,8], index: 2, kind: output, shape index: {0}]
  %s3 = inlined_call_operand.hbm [shape: f32[1,1,8,8], index: 3, kind: output, shape index: {1}]
  %4 = xla_tuple %s2, %s3
  %s5 = sld [smem:[#allocation0]]
  $region26: #{tpu_custom_call.1} parent=0
    _
  %s7 = ssub.s32 1, %s5
  %s8 = scalar_select 0, %s7, %s5
  $region1: #{tpu_custom_call.1} parent=0
    #allocation2 [shape = 'u8[4096]{0}', space=vmem, size = 0x1000, scoped, tag = 'output window, operand 0, single buffered']
    #allocation3 [shape = 's32[1]{0}', space=sflag, size = 0x4, scoped, tag = 'scoped memory for tpu_custom_call.1']
    #allocation4 [shape = 'u8[4096]{0}', space=vmem, size = 0x1000, scoped, tag = 'output window, operand 1, single buffered']
    #allocation5 [shape = 's32[1]{0}', space=sflag, size = 0x4, scoped, tag = 'scoped memory for tpu_custom_call.1']
    %9 = vsyncpa [#allocation3], 0
    %10 = vsyncpa [#allocation5], 0
    // Predicated region
    $region2: #{tpu_custom_call.1} parent=1 // pred_check
      _
    $region3: #{tpu_custom_call.1} parent=1 // pred_check_branch
      %12 = sbr.rel (0) target = $region5
    $region4: #{tpu_custom_call.1} parent=1 // pred_region
      _
    $region5: #{tpu_custom_call.1} parent=1 // pred_fallthru
      _
    // Predicated region
    $region6: #{tpu_custom_call.1} parent=1 // pred_check
      _
    $region7: #{tpu_custom_call.1} parent=1 // pred_check_branch
      %14 = sbr.rel (0) target = $region9
    $region8: #{tpu_custom_call.1} parent=1 // pred_region
      _
    $region9: #{tpu_custom_call.1} parent=1 // pred_fallthru
      _
    %v16 = vld [vmem:[%s0] sm:$0xf]
    %v17 = vld [vmem:[%s0 + $0x4] sm:$0xf]
    %v18 = vld [vmem:[%s0 + $0x8] sm:$0xf]
    %v19 = vld [vmem:[%s0 + $0xc] sm:$0xf]
    %v20 = vld [vmem:[%s0 + $0x10] sm:$0xf]
    %v21 = vld [vmem:[%s0 + $0x14] sm:$0xf]
    %v22 = vld [vmem:[%s0 + $0x18] sm:$0xf]
    %v23 = vld [vmem:[%s0 + $0x1c] sm:$0xf]
    %v24 = vld [vmem:[%s0 + $0x20] sm:$0xf]
    %v25 = vld [vmem:[%s0 + $0x24] sm:$0xf]
    %v26 = vld [vmem:[%s0 + $0x28] sm:$0xf]
    %v27 = vld [vmem:[%s0 + $0x2c] sm:$0xf]
    %v28 = vld [vmem:[%s0 + $0x30] sm:$0xf]
    %v29 = vld [vmem:[%s0 + $0x34] sm:$0xf]
    %v30 = vld [vmem:[%s0 + $0x38] sm:$0xf]
    %v31 = vld [vmem:[%s0 + $0x3c] sm:$0xf]
    %v32 = vld [vmem:[%s1] sm:$0xf]
    %v33 = vld [vmem:[%s1 + $0x4] sm:$0xf]
    %v34 = vld [vmem:[%s1 + $0x8] sm:$0xf]
    %v35 = vld [vmem:[%s1 + $0xc] sm:$0xf]
    %v36 = vld [vmem:[%s1 + $0x10] sm:$0xf]
    %v37 = vld [vmem:[%s1 + $0x14] sm:$0xf]
    %v38 = vld [vmem:[%s1 + $0x18] sm:$0xf]
    %v39 = vld [vmem:[%s1 + $0x1c] sm:$0xf]
    %v40 = vld [vmem:[%s1 + $0x20] sm:$0xf]
    %v41 = vld [vmem:[%s1 + $0x24] sm:$0xf]
    %v42 = vld [vmem:[%s1 + $0x28] sm:$0xf]
    %v43 = vld [vmem:[%s1 + $0x2c] sm:$0xf]
    %v44 = vld [vmem:[%s1 + $0x30] sm:$0xf]
    %v45 = vld [vmem:[%s1 + $0x34] sm:$0xf]
    %v46 = vld [vmem:[%s1 + $0x38] sm:$0xf]
    %v47 = vld [vmem:[%s1 + $0x3c] sm:$0xf]
    %v64 = vunpack.c.l.b16 %v16
    %v65 = vunpack.c.l.b16 %v17
    %v66 = vunpack.c.l.b16 %v18
    %v67 = vunpack.c.l.b16 %v19
    %v68 = vunpack.c.l.b16 %v20
    %v69 = vunpack.c.l.b16 %v21
    %v70 = vunpack.c.l.b16 %v22
    %v71 = vunpack.c.l.b16 %v23
    %v72 = vunpack.c.l.b16 %v24
    %v73 = vunpack.c.l.b16 %v25
    %v74 = vunpack.c.l.b16 %v26
    %v75 = vunpack.c.l.b16 %v27
    %v76 = vunpack.c.l.b16 %v28
    %v77 = vunpack.c.l.b16 %v29
    %v78 = vunpack.c.l.b16 %v30
    %v79 = vunpack.c.l.b16 %v31
    %v80 = vpack.c.b16 %v65, %v64
    %v81 = vpack.c.b16 %v67, %v66
    %v82 = vpack.c.b16 %v69, %v68
    %v83 = vpack.c.b16 %v71, %v70
    %v84 = vpack.c.b16 %v73, %v72
    %v85 = vpack.c.b16 %v75, %v74
    %v86 = vpack.c.b16 %v77, %v76
    %v87 = vpack.c.b16 %v79, %v78
    %v104 = vunpack.c.l.b16 %v32
    %v105 = vunpack.c.l.b16 %v33
    %v106 = vunpack.c.l.b16 %v34
    %v107 = vunpack.c.l.b16 %v35
    %v108 = vunpack.c.l.b16 %v36
    %v109 = vunpack.c.l.b16 %v37
    %v110 = vunpack.c.l.b16 %v38
    %v111 = vunpack.c.l.b16 %v39
    %v112 = vunpack.c.l.b16 %v40
    %v113 = vunpack.c.l.b16 %v41
    %v114 = vunpack.c.l.b16 %v42
    %v115 = vunpack.c.l.b16 %v43
    %v116 = vunpack.c.l.b16 %v44
    %v117 = vunpack.c.l.b16 %v45
    %v118 = vunpack.c.l.b16 %v46
    %v119 = vunpack.c.l.b16 %v47
    %v120 = vpack.c.b16 %v105, %v104
    %v121 = vpack.c.b16 %v107, %v106
    %v122 = vpack.c.b16 %v109, %v108
    %v123 = vpack.c.b16 %v111, %v110
    %v124 = vpack.c.b16 %v113, %v112
    %v125 = vpack.c.b16 %v115, %v114
    %v126 = vpack.c.b16 %v117, %v116
    %v127 = vpack.c.b16 %v119, %v118
    %vm128 = vcmask 261120
    %v130 = vsel %vm128, %v80, 0
    %v133 = vsel %vm128, %v81, 0
    %v136 = vsel %vm128, %v82, 0
    %v139 = vsel %vm128, %v83, 0
    %v142 = vsel %vm128, %v84, 0
    %v145 = vsel %vm128, %v85, 0
    %v148 = vsel %vm128, %v86, 0
    %v151 = vsel %vm128, %v87, 0
    %v154 = vsel %vm128, %v120, 0
    %v157 = vsel %vm128, %v121, 0
    %v160 = vsel %vm128, %v122, 0
    %v163 = vsel %vm128, %v123, 0
    %v166 = vsel %vm128, %v124, 0
    %v169 = vsel %vm128, %v125, 0
    %v172 = vsel %vm128, %v126, 0
    %v175 = vsel %vm128, %v127, 0
    %177 = vmatprep.subr.bf16.mxu0 0
    %178 = vmatpush1.bf16.xpose.msra.mxu0 %v154
    %179 = vmatprep.subr.bf16.mxu0 0
    %180 = vmatpush1.bf16.xpose.msra.mxu0 %v157
    %181 = vmatprep.subr.bf16.mxu0 0
    %182 = vmatpush1.bf16.xpose.msra.mxu0 %v160
    %183 = vmatprep.subr.bf16.mxu0 0
    %184 = vmatpush1.bf16.xpose.msra.mxu0 %v163
    %185 = vmatprep.subr.bf16.mxu0 0
    %186 = vmatpush1.bf16.xpose.msra.mxu0 %v166
    %187 = vmatprep.subr.bf16.mxu0 0
    %188 = vmatpush1.bf16.xpose.msra.mxu0 %v169
    %189 = vmatprep.subr.bf16.mxu0 0
    %190 = vmatpush1.bf16.xpose.msra.mxu0 %v172
    %191 = vmatprep.subr.bf16.mxu0 0
    %192 = vmatpush1.bf16.xpose.msra.mxu0 %v175
    %193 = vmatprep.subr.bf16.mxu0 0
    %194 = vmatpush1.bf16.xpose.msra.mxu0 0
    %195 = vmatprep.subr.bf16.mxu0 0
    %196 = vmatpush1.bf16.xpose.msra.mxu0 0
    %197 = vmatprep.subr.bf16.mxu0 0
    %198 = vmatpush1.bf16.xpose.msra.mxu0 0
    %199 = vmatprep.subr.bf16.mxu0 0
    %200 = vmatpush1.bf16.xpose.msra.mxu0 0
    %201 = vmatprep.subr.bf16.mxu0 0
    %202 = vmatpush1.bf16.xpose.msra.mxu0 0
    %203 = vmatprep.subr.bf16.mxu0 0
    %204 = vmatpush1.bf16.xpose.msra.mxu0 0
    %205 = vmatprep.subr.bf16.mxu0 0
    %206 = vmatpush1.bf16.xpose.msra.mxu0 0
    %207 = vmatprep.subr.bf16.mxu0 0
    %208 = vmatpush1.bf16.xpose.msra.mxu0 0
    %209 = vmatprep.mubr.bf16.mxu0 0
    %210 = vmatmul.mubr.bf16.gmra.mrb[0].mxu0 %v130
    %v211 = vpop.f32.mrb[0].mxu0
    %v212 = vadd.f32 0.0, %v211
    %v213 = vpop.f32.mrb[0].mxu0
    %v214 = vpop.f32.mrb[0].mxu0
    %v215 = vadd.f32 0.0, %v214
    %v216 = vpop.f32.mrb[0].mxu0
    %217 = vmatprep.mubr.bf16.mxu0 0
    %218 = vmatmul.mubr.bf16.gmra.mrb[0].mxu0 %v133
    %v219 = vpop.f32.mrb[0].mxu0
    %v220 = vadd.f32 0.0, %v219
    %v221 = vpop.f32.mrb[0].mxu0
    %v222 = vpop.f32.mrb[0].mxu0
    %v223 = vadd.f32 0.0, %v222
    %v224 = vpop.f32.mrb[0].mxu0
    %225 = vmatprep.mubr.bf16.mxu0 0
    %226 = vmatmul.mubr.bf16.gmra.mrb[0].mxu0 %v136
    %v227 = vpop.f32.mrb[0].mxu0
    %v228 = vadd.f32 0.0, %v227
    %v229 = vpop.f32.mrb[0].mxu0
    %v230 = vpop.f32.mrb[0].mxu0
    %v231 = vadd.f32 0.0, %v230
    %v232 = vpop.f32.mrb[0].mxu0
    %233 = vmatprep.mubr.bf16.mxu0 0
    %234 = vmatmul.mubr.bf16.gmra.mrb[0].mxu0 %v139
    %v235 = vpop.f32.mrb[0].mxu0
    %v236 = vadd.f32 0.0, %v235
    %v237 = vpop.f32.mrb[0].mxu0
    %v238 = vpop.f32.mrb[0].mxu0
    %v239 = vadd.f32 0.0, %v238
    %v240 = vpop.f32.mrb[0].mxu0
    %241 = vmatprep.mubr.bf16.mxu0 0
    %242 = vmatmul.mubr.bf16.gmra.mrb[0].mxu0 %v142
    %v243 = vpop.f32.mrb[0].mxu0
    %v244 = vadd.f32 0.0, %v243
    %v245 = vpop.f32.mrb[0].mxu0
    %v246 = vpop.f32.mrb[0].mxu0
    %v247 = vadd.f32 0.0, %v246
    %v248 = vpop.f32.mrb[0].mxu0
    %249 = vmatprep.mubr.bf16.mxu0 0
    %250 = vmatmul.mubr.bf16.gmra.mrb[0].mxu0 %v145
    %v251 = vpop.f32.mrb[0].mxu0
    %v252 = vadd.f32 0.0, %v251
    %v253 = vpop.f32.mrb[0].mxu0
    %v254 = vpop.f32.mrb[0].mxu0
    %v255 = vadd.f32 0.0, %v254
    %v256 = vpop.f32.mrb[0].mxu0
    %257 = vmatprep.mubr.bf16.mxu0 0
    %258 = vmatmul.mubr.bf16.gmra.mrb[0].mxu0 %v148
    %v259 = vpop.f32.mrb[0].mxu0
    %v260 = vadd.f32 0.0, %v259
    %v261 = vpop.f32.mrb[0].mxu0
    %v262 = vpop.f32.mrb[0].mxu0
    %v263 = vadd.f32 0.0, %v262
    %v264 = vpop.f32.mrb[0].mxu0
    %265 = vmatprep.mubr.bf16.mxu0 0
    %266 = vmatmul.mubr.bf16.gmra.mrb[0].mxu0 %v151
    %v267 = vpop.f32.mrb[0].mxu0
    %v268 = vadd.f32 0.0, %v267
    %v269 = vpop.f32.mrb[0].mxu0
    %v270 = vpop.f32.mrb[0].mxu0
    %v271 = vadd.f32 0.0, %v270
    %v272 = vpop.f32.mrb[0].mxu0
    %273 = vdwg.mxu0
    %v274 = vlaneseq
    %v275 = vshrl.u32 %v274, 7
    %v276 = vadd.s32 %v275, 8
    %vm277 = vcmp.ge.s32.totalorder %v275, 9
    %vm278 = vcmp.ge.s32.totalorder %v276, 9
    %v279 = vsel %vm277, 1, 0
    %v280 = vsel %vm278, 1, 0
    %vm281 = vcmp.eq.s32.totalorder %v279, 1
    %vm282 = vcmp.eq.s32.totalorder %v280, 1
    %v283 = vsel %vm281, -inf, %v212
    %v284 = vsel %vm282, -inf, %v215
    %v285 = vsel %vm281, -inf, %v220
    %v286 = vsel %vm282, -inf, %v223
    %v287 = vsel %vm281, -inf, %v228
    %v288 = vsel %vm282, -inf, %v231
    %v289 = vsel %vm281, -inf, %v236
    %v290 = vsel %vm282, -inf, %v239
    %v291 = vsel %vm281, -inf, %v244
    %v292 = vsel %vm282, -inf, %v247
    %v293 = vsel %vm281, -inf, %v252
    %v294 = vsel %vm282, -inf, %v255
    %v295 = vsel %vm281, -inf, %v260
    %v296 = vsel %vm282, -inf, %v263
    %v297 = vsel %vm281, -inf, %v268
    %v298 = vsel %vm282, -inf, %v271
    %v299 = vmax.f32 %v283, %v284
    %v300 = vrot.slane %v299, 4
    %v301 = vmax.f32 %v299, %v300
    %v302 = vrot.slane %v301, 2
    %v303 = vmax.f32 %v301, %v302
    %v304 = vrot.slane %v303, 1
    %v305 = vmax.f32 %v303, %v304
    %v306 = vmax.f32 %v285, %v286
    %v307 = vrot.slane %v306, 4
    %v308 = vmax.f32 %v306, %v307
    %v309 = vrot.slane %v308, 2
    %v310 = vmax.f32 %v308, %v309
    %v311 = vrot.slane %v310, 1
    %v312 = vmax.f32 %v310, %v311
    %v313 = vmax.f32 %v287, %v288
    %v314 = vrot.slane %v313, 4
    %v315 = vmax.f32 %v313, %v314
    %v316 = vrot.slane %v315, 2
    %v317 = vmax.f32 %v315, %v316
    %v318 = vrot.slane %v317, 1
    %v319 = vmax.f32 %v317, %v318
    %v320 = vmax.f32 %v289, %v290
    %v321 = vrot.slane %v320, 4
    %v322 = vmax.f32 %v320, %v321
    %v323 = vrot.slane %v322, 2
    %v324 = vmax.f32 %v322, %v323
    %v325 = vrot.slane %v324, 1
    %v326 = vmax.f32 %v324, %v325
    %v327 = vmax.f32 %v291, %v292
    %v328 = vrot.slane %v327, 4
    %v329 = vmax.f32 %v327, %v328
    %v330 = vrot.slane %v329, 2
    %v331 = vmax.f32 %v329, %v330
    %v332 = vrot.slane %v331, 1
    %v333 = vmax.f32 %v331, %v332
    %v334 = vmax.f32 %v293, %v294
    %v335 = vrot.slane %v334, 4
    %v336 = vmax.f32 %v334, %v335
    %v337 = vrot.slane %v336, 2
    %v338 = vmax.f32 %v336, %v337
    %v339 = vrot.slane %v338, 1
    %v340 = vmax.f32 %v338, %v339
    %v341 = vmax.f32 %v295, %v296
    %v342 = vrot.slane %v341, 4
    %v343 = vmax.f32 %v341, %v342
    %v344 = vrot.slane %v343, 2
    %v345 = vmax.f32 %v343, %v344
    %v346 = vrot.slane %v345, 1
    %v347 = vmax.f32 %v345, %v346
    %v348 = vmax.f32 %v297, %v298
    %v349 = vrot.slane %v348, 4
    %v350 = vmax.f32 %v348, %v349
    %v351 = vrot.slane %v350, 2
    %v352 = vmax.f32 %v350, %v351
    %v353 = vrot.slane %v352, 1
    %v354 = vmax.f32 %v352, %v353
    %v355 = vadd.s32 %v275, 16
    %v356 = vadd.s32 %v275, 24
    %v357 = vadd.s32 %v275, 32
    %v358 = vadd.s32 %v275, 40
    %v359 = vadd.s32 %v275, 48
    %v360 = vadd.s32 %v275, 56
    %v361 = vadd.s32 %v275, 64
    %v362 = vadd.s32 %v275, 72
    %v363 = vadd.s32 %v275, 80
    %v364 = vadd.s32 %v275, 88
    %v365 = vadd.s32 %v275, 96
    %v366 = vadd.s32 %v275, 104
    %v367 = vadd.s32 %v275, 112
    %v368 = vadd.s32 %v275, 120
    %v369 = vlaneseq
    %v370 = vand.u32 %v369, 127
    %v371 = vmul.u32 %v370, 16
    %vm372 = vcmp.ge.s32.totalorder %v275, %v371
    %vm373 = vcmp.ge.s32.totalorder %v276, %v371
    %vm374 = vcmp.ge.s32.totalorder %v355, %v371
    %vm375 = vcmp.ge.s32.totalorder %v356, %v371
    %vm376 = vcmp.ge.s32.totalorder %v357, %v371
    %vm377 = vcmp.ge.s32.totalorder %v358, %v371
    %vm378 = vcmp.ge.s32.totalorder %v359, %v371
    %vm379 = vcmp.ge.s32.totalorder %v360, %v371
    %vm380 = vcmp.ge.s32.totalorder %v361, %v371
    %vm381 = vcmp.ge.s32.totalorder %v362, %v371
    %vm382 = vcmp.ge.s32.totalorder %v363, %v371
    %vm383 = vcmp.ge.s32.totalorder %v364, %v371
    %vm384 = vcmp.ge.s32.totalorder %v365, %v371
    %vm385 = vcmp.ge.s32.totalorder %v366, %v371
    %vm386 = vcmp.ge.s32.totalorder %v367, %v371
    %vm387 = vcmp.ge.s32.totalorder %v368, %v371
    %v388 = vadd.s32 %v371, 9
    %vm389 = vcmp.lt.s32.totalorder %v275, %v388
    %vm390 = vcmp.lt.s32.totalorder %v276, %v388
    %vm391 = vcmp.lt.s32.totalorder %v355, %v388
    %vm392 = vcmp.lt.s32.totalorder %v356, %v388
    %vm393 = vcmp.lt.s32.totalorder %v357, %v388
    %vm394 = vcmp.lt.s32.totalorder %v358, %v388
    %vm395 = vcmp.lt.s32.totalorder %v359, %v388
    %vm396 = vcmp.lt.s32.totalorder %v360, %v388
    %vm397 = vcmp.lt.s32.totalorder %v361, %v388
    %vm398 = vcmp.lt.s32.totalorder %v362, %v388
    %vm399 = vcmp.lt.s32.totalorder %v363, %v388
    %vm400 = vcmp.lt.s32.totalorder %v364, %v388
    %vm401 = vcmp.lt.s32.totalorder %v365, %v388
    %vm402 = vcmp.lt.s32.totalorder %v366, %v388
    %vm403 = vcmp.lt.s32.totalorder %v367, %v388
    %vm404 = vcmp.lt.s32.totalorder %v368, %v388
    %vm405 = vmand %vm372, %vm389
    %vm406 = vmand %vm373, %vm390
    %vm407 = vmand %vm374, %vm391
    %vm408 = vmand %vm375, %vm392
    %vm409 = vmand %vm376, %vm393
    %vm410 = vmand %vm377, %vm394
    %vm411 = vmand %vm378, %vm395
    %vm412 = vmand %vm379, %vm396
    %vm413 = vmand %vm380, %vm397
    %vm414 = vmand %vm381, %vm398
    %vm415 = vmand %vm382, %vm399
    %vm416 = vmand %vm383, %vm400
    %vm417 = vmand %vm384, %vm401
    %vm418 = vmand %vm385, %vm402
    %vm419 = vmand %vm386, %vm403
    %vm420 = vmand %vm387, %vm404
    %v421 = vsel %vm405, 1, 0
    %v422 = vsel %vm406, 1, 0
    %v423 = vsel %vm407, 1, 0
    %v424 = vsel %vm408, 1, 0
    %v425 = vsel %vm409, 1, 0
    %v426 = vsel %vm410, 1, 0
    %v427 = vsel %vm411, 1, 0
    %v428 = vsel %vm412, 1, 0
    %v429 = vsel %vm413, 1, 0
    %v430 = vsel %vm414, 1, 0
    %v431 = vsel %vm415, 1, 0
    %v432 = vsel %vm416, 1, 0
    %v433 = vsel %vm417, 1, 0
    %v434 = vsel %vm418, 1, 0
    %v435 = vsel %vm419, 1, 0
    %v436 = vsel %vm420, 1, 0
    %v437 = vcvt.s32.f32 %v421
    %v438 = vcvt.s32.f32 %v422
    %v439 = vcvt.s32.f32 %v423
    %v440 = vcvt.s32.f32 %v424
    %v441 = vcvt.s32.f32 %v425
    %v442 = vcvt.s32.f32 %v426
    %v443 = vcvt.s32.f32 %v427
    %v444 = vcvt.s32.f32 %v428
    %v445 = vcvt.s32.f32 %v429
    %v446 = vcvt.s32.f32 %v430
    %v447 = vcvt.s32.f32 %v431
    %v448 = vcvt.s32.f32 %v432
    %v449 = vcvt.s32.f32 %v433
    %v450 = vcvt.s32.f32 %v434
    %v451 = vcvt.s32.f32 %v435
    %v452 = vcvt.s32.f32 %v436
    %vm461 = vcmask 1041409
    %v462 = vsel %vm461, %v312, %v305
    %vm463 = vcmask 1042434
    %v464 = vsel %vm463, %v319, %v462
    %vm465 = vcmask 1043459
    %v466 = vsel %vm465, %v326, %v464
    %vm467 = vcmask 1044484
    %v468 = vsel %vm467, %v333, %v466
    %vm469 = vcmask 1045509
    %v470 = vsel %vm469, %v340, %v468
    %vm471 = vcmask 1046534
    %v472 = vsel %vm471, %v347, %v470
    %vm473 = vcmask 1047559
    %v474 = vsel %vm473, %v354, %v472
    %476 = vmatprep.subr.mxu0 0.0
    %477 = vmatpush1.msra.mxu0 %v437
    %478 = vmatprep.subr.mxu0 0.0
    %479 = vmatpush1.msra.mxu0 %v438
    %480 = vmatprep.subr.mxu0 0.0
    %481 = vmatpush1.msra.mxu0 %v439
    %482 = vmatprep.subr.mxu0 0.0
    %483 = vmatpush1.msra.mxu0 %v440
    %484 = vmatprep.subr.mxu0 0.0
    %485 = vmatpush1.msra.mxu0 %v441
    %486 = vmatprep.subr.mxu0 0.0
    %487 = vmatpush1.msra.mxu0 %v442
    %488 = vmatprep.subr.mxu0 0.0
    %489 = vmatpush1.msra.mxu0 %v443
    %490 = vmatprep.subr.mxu0 0.0
    %491 = vmatpush1.msra.mxu0 %v444
    %492 = vmatprep.subr.mxu0 0.0
    %493 = vmatpush1.msra.mxu0 %v445
    %494 = vmatprep.subr.mxu0 0.0
    %495 = vmatpush1.msra.mxu0 %v446
    %496 = vmatprep.subr.mxu0 0.0
    %497 = vmatpush1.msra.mxu0 %v447
    %498 = vmatprep.subr.mxu0 0.0
    %499 = vmatpush1.msra.mxu0 %v448
    %500 = vmatprep.subr.mxu0 0.0
    %501 = vmatpush1.msra.mxu0 %v449
    %502 = vmatprep.subr.mxu0 0.0
    %503 = vmatpush1.msra.mxu0 %v450
    %504 = vmatprep.subr.mxu0 0.0
    %505 = vmatpush1.msra.mxu0 %v451
    %506 = vmatprep.subr.mxu0 0.0
    %507 = vmatpush1.msra.mxu0 %v452
    %508 = vmatprep.subr.mxu0 0.0
    %509 = vmatpush1.msra.mxu0 0.0
    %510 = vmatprep.subr.mxu0 0.0
    %511 = vmatpush1.msra.mxu0 0.0
    %512 = vmatprep.subr.mxu0 0.0
    %513 = vmatpush1.msra.mxu0 0.0
    %514 = vmatprep.subr.mxu0 0.0
    %515 = vmatpush1.msra.mxu0 0.0
    %516 = vmatprep.subr.mxu0 0.0
    %517 = vmatpush1.msra.mxu0 0.0
    %518 = vmatprep.subr.mxu0 0.0
    %519 = vmatpush1.msra.mxu0 0.0
    %520 = vmatprep.subr.mxu0 0.0
    %521 = vmatpush1.msra.mxu0 0.0
    %522 = vmatprep.subr.mxu0 0.0
    %523 = vmatpush1.msra.mxu0 0.0
    %524 = vmatprep.subr.mxu0 0.0
    %525 = vmatpush1.msra.mxu0 0.0
    %526 = vmatprep.subr.mxu0 0.0
    %527 = vmatpush1.msra.mxu0 0.0
    %528 = vmatprep.subr.mxu0 0.0
    %529 = vmatpush1.msra.mxu0 0.0
    %530 = vmatprep.subr.mxu0 0.0
    %531 = vmatpush1.msra.mxu0 0.0
    %532 = vmatprep.subr.mxu0 0.0
    %533 = vmatpush1.msra.mxu0 0.0
    %534 = vmatprep.subr.mxu0 0.0
    %535 = vmatpush1.msra.mxu0 0.0
    %536 = vmatprep.subr.mxu0 0.0
    %537 = vmatpush1.msra.mxu0 0.0
    %538 = vmatprep.subr.mxu0 0.0
    %539 = vmatpush1.msra.mxu0 0.0
    %540 = vmatprep.mubr.f32.mxu0 0.0
    %541 = vmatmul.mubr.f32.gmra.mrb[0].mxu0 %v474
    %v542 = vpop.f32.mrb[0].mxu0
    %v543 = vadd.f32 0.0, %v542
    %v544 = vpop.f32.mrb[0].mxu0
    %545 = vdwg.mxu0
    %vm546 = vcmask 64512
    %547 = vst.msk [vmem:[#allocation2] sm:$0xff] %vm546, %v543
    %548 = vxpose.xlu0.b32.start [1/16] %v212, 128
    %549 = vxpose.xlu0.b32.cont [2/16] %v215, 128
    %550 = vxpose.xlu0.b32.cont [3/16] %v220, 128
    %551 = vxpose.xlu0.b32.cont [4/16] %v223, 128
    %552 = vxpose.xlu0.b32.cont [5/16] %v228, 128
    %553 = vxpose.xlu0.b32.cont [6/16] %v231, 128
    %554 = vxpose.xlu0.b32.cont [7/16] %v236, 128
    %555 = vxpose.xlu0.b32.cont [8/16] %v239, 128
    %556 = vxpose.xlu0.b32.cont [9/16] %v244, 128
    %557 = vxpose.xlu0.b32.cont [10/16] %v247, 128
    %558 = vxpose.xlu0.b32.cont [11/16] %v252, 128
    %559 = vxpose.xlu0.b32.cont [12/16] %v255, 128
    %560 = vxpose.xlu0.b32.cont [13/16] %v260, 128
    %561 = vxpose.xlu0.b32.cont [14/16] %v263, 128
    %562 = vxpose.xlu0.b32.cont [15/16] %v268, 128
    %563 = vxpose.xlu0.b32.end [16/16] %v271, 128
    %v564 = vpop.trf.xlu0
    %v565 = vpop.trf.xlu0
    %v566 = vpop.trf.xlu0
    %v567 = vpop.trf.xlu0
    %v568 = vpop.trf.xlu0
    %v569 = vpop.trf.xlu0
    %v570 = vpop.trf.xlu0
    %v571 = vpop.trf.xlu0
    %v572 = vpop.trf.xlu0
    %v573 = vpop.trf.xlu0
    %v574 = vpop.trf.xlu0
    %v575 = vpop.trf.xlu0
    %v576 = vpop.trf.xlu0
    %v577 = vpop.trf.xlu0
    %v578 = vpop.trf.xlu0
    %v579 = vpop.trf.xlu0
    %v580 = vsel %vm281, -inf, %v564
    %v581 = vsel %vm282, -inf, %v565
    %v582 = vsel %vm281, -inf, %v566
    %v583 = vsel %vm282, -inf, %v567
    %v584 = vsel %vm281, -inf, %v568
    %v585 = vsel %vm282, -inf, %v569
    %v586 = vsel %vm281, -inf, %v570
    %v587 = vsel %vm282, -inf, %v571
    %v588 = vsel %vm281, -inf, %v572
    %v589 = vsel %vm282, -inf, %v573
    %v590 = vsel %vm281, -inf, %v574
    %v591 = vsel %vm282, -inf, %v575
    %v592 = vsel %vm281, -inf, %v576
    %v593 = vsel %vm282, -inf, %v577
    %v594 = vsel %vm281, -inf, %v578
    %v595 = vsel %vm282, -inf, %v579
    %v596 = vmax.f32 %v580, %v581
    %v597 = vrot.slane %v596, 4
    %v598 = vmax.f32 %v596, %v597
    %v599 = vrot.slane %v598, 2
    %v600 = vmax.f32 %v598, %v599
    %v601 = vrot.slane %v600, 1
    %v602 = vmax.f32 %v600, %v601
    %v603 = vmax.f32 %v582, %v583
    %v604 = vrot.slane %v603, 4
    %v605 = vmax.f32 %v603, %v604
    %v606 = vrot.slane %v605, 2
    %v607 = vmax.f32 %v605, %v606
    %v608 = vrot.slane %v607, 1
    %v609 = vmax.f32 %v607, %v608
    %v610 = vmax.f32 %v584, %v585
    %v611 = vrot.slane %v610, 4
    %v612 = vmax.f32 %v610, %v611
    %v613 = vrot.slane %v612, 2
    %v614 = vmax.f32 %v612, %v613
    %v615 = vrot.slane %v614, 1
    %v616 = vmax.f32 %v614, %v615
    %v617 = vmax.f32 %v586, %v587
    %v618 = vrot.slane %v617, 4
    %v619 = vmax.f32 %v617, %v618
    %v620 = vrot.slane %v619, 2
    %v621 = vmax.f32 %v619, %v620
    %v622 = vrot.slane %v621, 1
    %v623 = vmax.f32 %v621, %v622
    %v624 = vmax.f32 %v588, %v589
    %v625 = vrot.slane %v624, 4
    %v626 = vmax.f32 %v624, %v625
    %v627 = vrot.slane %v626, 2
    %v628 = vmax.f32 %v626, %v627
    %v629 = vrot.slane %v628, 1
    %v630 = vmax.f32 %v628, %v629
    %v631 = vmax.f32 %v590, %v591
    %v632 = vrot.slane %v631, 4
    %v633 = vmax.f32 %v631, %v632
    %v634 = vrot.slane %v633, 2
    %v635 = vmax.f32 %v633, %v634
    %v636 = vrot.slane %v635, 1
    %v637 = vmax.f32 %v635, %v636
    %v638 = vmax.f32 %v592, %v593
    %v639 = vrot.slane %v638, 4
    %v640 = vmax.f32 %v638, %v639
    %v641 = vrot.slane %v640, 2
    %v642 = vmax.f32 %v640, %v641
    %v643 = vrot.slane %v642, 1
    %v644 = vmax.f32 %v642, %v643
    %v645 = vmax.f32 %v594, %v595
    %v646 = vrot.slane %v645, 4
    %v647 = vmax.f32 %v645, %v646
    %v648 = vrot.slane %v647, 2
    %v649 = vmax.f32 %v647, %v648
    %v650 = vrot.slane %v649, 1
    %v651 = vmax.f32 %v649, %v650
    %v660 = vsel %vm461, %v609, %v602
    %v661 = vsel %vm463, %v616, %v660
    %v662 = vsel %vm465, %v623, %v661
    %v663 = vsel %vm467, %v630, %v662
    %v664 = vsel %vm469, %v637, %v663
    %v665 = vsel %vm471, %v644, %v664
    %v666 = vsel %vm473, %v651, %v665
    %668 = vmatprep.subr.mxu0 0.0
    %669 = vmatpush1.msra.mxu0 %v437
    %670 = vmatprep.subr.mxu0 0.0
    %671 = vmatpush1.msra.mxu0 %v438
    %672 = vmatprep.subr.mxu0 0.0
    %673 = vmatpush1.msra.mxu0 %v439
    %674 = vmatprep.subr.mxu0 0.0
    %675 = vmatpush1.msra.mxu0 %v440
    %676 = vmatprep.subr.mxu0 0.0
    %677 = vmatpush1.msra.mxu0 %v441
    %678 = vmatprep.subr.mxu0 0.0
    %679 = vmatpush1.msra.mxu0 %v442
    %680 = vmatprep.subr.mxu0 0.0
    %681 = vmatpush1.msra.mxu0 %v443
    %682 = vmatprep.subr.mxu0 0.0
    %683 = vmatpush1.msra.mxu0 %v444
    %684 = vmatprep.subr.mxu0 0.0
    %685 = vmatpush1.msra.mxu0 %v445
    %686 = vmatprep.subr.mxu0 0.0
    %687 = vmatpush1.msra.mxu0 %v446
    %688 = vmatprep.subr.mxu0 0.0
    %689 = vmatpush1.msra.mxu0 %v447
    %690 = vmatprep.subr.mxu0 0.0
    %691 = vmatpush1.msra.mxu0 %v448
    %692 = vmatprep.subr.mxu0 0.0
    %693 = vmatpush1.msra.mxu0 %v449
    %694 = vmatprep.subr.mxu0 0.0
    %695 = vmatpush1.msra.mxu0 %v450
    %696 = vmatprep.subr.mxu0 0.0
    %697 = vmatpush1.msra.mxu0 %v451
    %698 = vmatprep.subr.mxu0 0.0
    %699 = vmatpush1.msra.mxu0 %v452
    %700 = vmatprep.subr.mxu0 0.0
    %701 = vmatpush1.msra.mxu0 0.0
    %702 = vmatprep.subr.mxu0 0.0
    %703 = vmatpush1.msra.mxu0 0.0
    %704 = vmatprep.subr.mxu0 0.0
    %705 = vmatpush1.msra.mxu0 0.0
    %706 = vmatprep.subr.mxu0 0.0
    %707 = vmatpush1.msra.mxu0 0.0
    %708 = vmatprep.subr.mxu0 0.0
    %709 = vmatpush1.msra.mxu0 0.0
    %710 = vmatprep.subr.mxu0 0.0
    %711 = vmatpush1.msra.mxu0 0.0
    %712 = vmatprep.subr.mxu0 0.0
    %713 = vmatpush1.msra.mxu0 0.0
    %714 = vmatprep.subr.mxu0 0.0
    %715 = vmatpush1.msra.mxu0 0.0
    %716 = vmatprep.subr.mxu0 0.0
    %717 = vmatpush1.msra.mxu0 0.0
    %718 = vmatprep.subr.mxu0 0.0
    %719 = vmatpush1.msra.mxu0 0.0
    %720 = vmatprep.subr.mxu0 0.0
    %721 = vmatpush1.msra.mxu0 0.0
    %722 = vmatprep.subr.mxu0 0.0
    %723 = vmatpush1.msra.mxu0 0.0
    %724 = vmatprep.subr.mxu0 0.0
    %725 = vmatpush1.msra.mxu0 0.0
    %726 = vmatprep.subr.mxu0 0.0
    %727 = vmatpush1.msra.mxu0 0.0
    %728 = vmatprep.subr.mxu0 0.0
    %729 = vmatpush1.msra.mxu0 0.0
    %730 = vmatprep.subr.mxu0 0.0
    %731 = vmatpush1.msra.mxu0 0.0
    %732 = vmatprep.mubr.f32.mxu0 0.0
    %733 = vmatmul.mubr.f32.gmra.mrb[0].mxu0 %v666
    %v734 = vpop.f32.mrb[0].mxu0
    %v735 = vadd.f32 0.0, %v734
    %v736 = vpop.f32.mrb[0].mxu0
    %737 = vdwg.mxu0
    %738 = vst.msk [vmem:[#allocation4] sm:$0xff] %vm546, %v735
    // Predicated region
    $region10: #{tpu_custom_call.1} parent=1 // pred_check
      _
    $region11: #{tpu_custom_call.1} parent=1 // pred_check_branch
      %740 = sbr.rel (0) target = $region13
    $region12: #{tpu_custom_call.1} parent=1 // pred_region
      %s742 = ssub.s32 128, 128
      %743 = vsyncadd [#allocation3], %s742
      %s745 = sshll.u32 [#allocation2], 4
      %s746 = int_to_ptr.vmem [resolvable:$true] %s745
      %748 = dma.vmem_to_hbm [thread:$0]  %s746, 128, %s2, [#allocation3]
    $region13: #{tpu_custom_call.1} parent=1 // pred_fallthru
      _
    // Predicated region
    $region14: #{tpu_custom_call.1} parent=1 // pred_check
      _
    $region15: #{tpu_custom_call.1} parent=1 // pred_check_branch
      %750 = sbr.rel (0) target = $region17
    $region16: #{tpu_custom_call.1} parent=1 // pred_region
      %s752 = ssub.s32 128, 128
      %753 = vsyncadd [#allocation5], %s752
      %s755 = sshll.u32 [#allocation4], 4
      %s756 = int_to_ptr.vmem [resolvable:$true] %s755
      %758 = dma.vmem_to_hbm [thread:$0]  %s756, 128, %s3, [#allocation5]
    $region17: #{tpu_custom_call.1} parent=1 // pred_fallthru
      _
    // Predicated region
    $region18: #{tpu_custom_call.1} parent=1 // pred_check
      _
    $region19: #{tpu_custom_call.1} parent=1 // pred_check_branch
      %760 = sbr.rel (0) target = $region21
    $region20: #{tpu_custom_call.1} parent=1 // pred_region
      %761 = dma.done [#allocation3], 128
    $region21: #{tpu_custom_call.1} parent=1 // pred_fallthru
      _
    // Predicated region
    $region22: #{tpu_custom_call.1} parent=1 // pred_check
      _
    $region23: #{tpu_custom_call.1} parent=1 // pred_check_branch
      %763 = sbr.rel (0) target = $region25
    $region24: #{tpu_custom_call.1} parent=1 // pred_region
      %764 = dma.done [#allocation5], 128
    $region25: #{tpu_custom_call.1} parent=1 // pred_fallthru
      _
    %765 = vsyncpa [#allocation3], 1
    %766 = vsyncpa [#allocation5], 1

</llo_original>
